<compile_context>
chip_gen: v7x
topology: tpu7x:2x2x1
jax: 0.10.0
libtpu: 0.0.40
codegen_flags: <defaults>
</compile_context>

<pallas_src>
import functools

import jax
import jax.numpy as jnp
from jax.experimental import pallas as pl
from jax.experimental.pallas import tpu as pltpu

LANES = 128
SUBLANES = 8
MAX_BLOCK_BYTES = 8 << 20       # pred+true HBM bytes per grid step (~8 MiB)
INNER_ROWS = 512                # rows per in-kernel accumulation sub-chunk
SMALL_INPUT_ELEMS = 1 << 17     # below this, plain JAX beats a kernel launch


def _round_up(x, m):
    return ((x + m - 1) // m) * m


def _tpu_topology():
    """(tensorcores_per_device, vmem_limit_cap_bytes) with safe fallbacks."""
    kind = ""
    try:
        kind = jax.devices()[0].device_kind.lower()
    except Exception:  # pragma: no cover - defensive
        pass
    if ("v7" in kind) or ("7x" in kind):
        return 2, 48 << 20        # 2 TC/chip, only 64 MiB VMEM per TC
    if ("v4" in kind) or ("v5p" in kind):
        return 2, 64 << 20        # megacore chips with 128 MiB VMEM
    return 1, 64 << 20            # v5e / v6e: single TC, 128 MiB VMEM


def _rmse_partial_kernel(pred_ref, true_ref, out_ref, *,
                         rows, block_rows, inner_rows, steps_per_chunk,
                         full_blocks, need_mask):
    c = pl.program_id(0)          # chunk (sharded across TCs on v7x)
    i = pl.program_id(1)          # reduction step within the chunk

    @pl.when(i == 0)
    def _init():
        out_ref[...] = jnp.zeros_like(out_ref)

    n_inner = block_rows // inner_rows
    blk = c * steps_per_chunk + i  # logical (unclamped) block index

    def _block_sum(masked):
        def body(r, acc):
            r0 = pl.multiple_of(r * inner_rows, inner_rows)
            p = pred_ref[pl.ds(r0, inner_rows), :].astype(jnp.float32)
            t = true_ref[pl.ds(r0, inner_rows), :].astype(jnp.float32)
            d = p - t
            sq = d * d
            if masked:
                # NOTE: must stay a jnp.where (select), NOT `sq * mask`:
                # padded / duplicated rows hold uninitialized VMEM garbage
                # (possibly NaN/Inf) which a multiply would propagate.
                row_ids = (blk * block_rows + r0 +
                           jax.lax.broadcasted_iota(jnp.int32, sq.shape, 0))
                sq = jnp.where(row_ids < rows, sq, 0.0)
            # (inner_rows,128)->(n,8,128) is (8,128)-tile aligned (free view);
            # the axis-0 sum is pure element-wise VPU adds, no XLU.
            return acc + jnp.sum(sq.reshape(-1, SUBLANES, LANES), axis=0)

        return jax.lax.fori_loop(0, n_inner, body,
                                 jnp.zeros((SUBLANES, LANES), jnp.float32))

    if need_mask:
        # Hot path: fully-valid interior blocks pay zero masking cost.
        @pl.when(blk < full_blocks)
        def _interior():
            out_ref[...] += _block_sum(False)[None]

        # Edge path: the partial last block and any clamped duplicate blocks.
        @pl.when(blk >= full_blocks)
        def _edge():
            out_ref[...] += _block_sum(True)[None]
    else:
        out_ref[...] += _block_sum(False)[None]


def _sum_sq_diff_pallas(pred2d, true2d, rows):
    """Sum of squared differences over a (rows, 128) slab, via Pallas."""
    itemsize_p = jnp.dtype(pred2d.dtype).itemsize
    itemsize_t = jnp.dtype(true2d.dtype).itemsize

    # Sub-32-bit dtypes pack along sublanes: bf16 -> 16 rows/vreg, int8 -> 32.
    pack = max(8 * max(1, 4 // itemsize_p), 8 * max(1, 4 // itemsize_t))

    # Keep ~MAX_BLOCK_BYTES of pred+true HBM traffic per grid step.
    bytes_per_row = LANES * (itemsize_p + itemsize_t)
    max_rows = max(INNER_ROWS, MAX_BLOCK_BYTES // bytes_per_row)

    block_rows = min(max_rows, _round_up(rows, pack))
    inner_rows = min(INNER_ROWS, block_rows)
    block_rows = _round_up(block_rows, inner_rows)

    n_blocks = pl.cdiv(rows, block_rows)

    # Only shard across chunks when the chip really has 2 TensorCores and the
    # split doesn't cost a wasted duplicate block on small inputs.
    n_cores, vmem_cap = _tpu_topology()
    if n_cores >= 2 and n_blocks >= 2 and (n_blocks % 2 == 0 or n_blocks >= 8):
        n_par = 2
    else:
        n_par = 1
    steps = pl.cdiv(n_blocks, n_par)

    need_clamp = (n_par * steps != n_blocks)          # duplicate trailing block
    need_mask = need_clamp or (rows % block_rows != 0)
    full_blocks = rows // block_rows                  # fully-valid block count

    if need_clamp:
        # Clamp so the DMA never indexes a block fully past the array; the
        # in-kernel edge mask zeroes the duplicated contribution.
        def in_index_map(c, i):
            return (jnp.minimum(c * steps + i, n_blocks - 1), 0)
    else:
        def in_index_map(c, i):
            return (c * steps + i, 0)

    kernel = functools.partial(
        _rmse_partial_kernel, rows=rows, block_rows=block_rows,
        inner_rows=inner_rows, steps_per_chunk=steps,
        full_blocks=full_blocks, need_mask=need_mask)

    # VMEM budget: 2 pipeline buffers x (pred+true block) + a few f32
    # sub-chunk temporaries + margin for compiler scratch / accumulator.
    block_bytes = block_rows * bytes_per_row
    temp_bytes = 4 * inner_rows * LANES * 4
    vmem_needed = 2 * block_bytes + temp_bytes + (4 << 20)
    vmem_limit = int(min(max(vmem_needed, 16 << 20), vmem_cap))

    partials = pl.pallas_call(
        kernel,
        out_shape=jax.ShapeDtypeStruct((n_par, SUBLANES, LANES), jnp.float32),
        grid_spec=pltpu.PrefetchScalarGridSpec(
            num_scalar_prefetch=0,
            grid=(n_par, steps),
            in_specs=[
                pl.BlockSpec((block_rows, LANES), in_index_map),
                pl.BlockSpec((block_rows, LANES), in_index_map),
            ],
            out_specs=pl.BlockSpec((1, SUBLANES, LANES),
                                   lambda c, i: (c, 0, 0)),
        ),
        compiler_params=pltpu.CompilerParams(
            dimension_semantics=("parallel", "arbitrary"),
            vmem_limit_bytes=vmem_limit),
    )(pred2d, true2d)

    # Single tiny cross-lane/sublane reduction, outside the hot loop.
    return jnp.sum(partials)


def rmse_loss(y_pred, y_true, eps=1e-08):
    assert y_pred.shape == y_true.shape, "RMSELoss requires matching shapes"
    n_elems = y_pred.size

    pred_flat = y_pred.reshape(-1)
    true_flat = y_true.reshape(-1)

    if n_elems <= SMALL_INPUT_ELEMS:
        # Tiny tensors: a fused XLA reduce beats the kernel launch latency.
        d = pred_flat.astype(jnp.float32) - true_flat.astype(jnp.float32)
        total_ssq = jnp.sum(d * d)
    else:
        rows = n_elems // LANES
        n_main = rows * LANES

        pred2d = pred_flat[:n_main].reshape(rows, LANES)   # no-copy view
        true2d = true_flat[:n_main].reshape(rows, LANES)
        total_ssq = _sum_sq_diff_pallas(pred2d, true2d, rows)

        if n_main != n_elems:
            # < 128 trailing elements: reduce in plain JAX (negligible).
            d_tail = (pred_flat[n_main:].astype(jnp.float32) -
                      true_flat[n_main:].astype(jnp.float32))
            total_ssq = total_ssq + jnp.sum(d_tail * d_tail)

    mse = total_ssq / jnp.float32(n_elems)
    return jnp.sqrt(mse + jnp.float32(eps))


if __name__ == "__main__":
    key = jax.random.PRNGKey(0)
    ks = jax.random.split(key, 8)

    def check(yp, yt, rtol=1e-4, atol=1e-6):
        loss = rmse_loss(yp, yt)
        jax.block_until_ready(loss)
        d = yp.astype(jnp.float32) - yt.astype(jnp.float32)
        ref = jnp.sqrt(jnp.mean(d * d) + 1e-08)
        assert jnp.allclose(loss, ref, rtol=rtol, atol=atol), (loss, ref)

    # Small NCHW input (batch=2, channels=4, 16x16): small-input bypass path.
    check(jax.random.normal(ks[0], (2, 4, 16, 16), jnp.float32),
          jax.random.normal(ks[1], (2, 4, 16, 16), jnp.float32))

    # Ragged tiny input (also bypass path).
    check(jax.random.normal(ks[2], (3, 5, 7, 11), jnp.float32),
          jax.random.normal(ks[3], (3, 5, 7, 11), jnp.float32))

    # Ragged medium input: Pallas path with edge-block mask + plain-JAX tail.
    check(jax.random.normal(ks[4], (1, 3, 333, 257), jnp.float32),
          jax.random.normal(ks[5], (1, 3, 333, 257), jnp.float32))

    # Larger input: multi-block accumulation (and 2-TC chunk split on v7x).
    check(jax.random.normal(ks[6], (2, 4, 512, 512), jnp.float32),
          jax.random.normal(ks[7], (2, 4, 512, 512), jnp.float32))

    print("KERNEL_OK")
</pallas_src>

<mosaic_0001>
module attributes {stable_mosaic.version = 11 : i64} {
  func.func @_rmse_partial_kernel(%arg0: i32, %arg1: i32, %arg2: memref<2048x128xf32, #tpu.memory_space<vmem>>, %arg3: memref<2048x128xf32, #tpu.memory_space<vmem>>, %arg4: memref<1x8x128xf32, #tpu.memory_space<vmem>>) attributes {dimension_semantics = [#tpu.dimension_semantics<parallel>, #tpu.dimension_semantics<arbitrary>], iteration_bounds = array<i64: 1, 1>, scalar_prefetch = 0 : i64, scratch_operands = 0 : i64, tpu.core_type = #tpu.core_type<tc>, window_params = [{transform_indices = @transform_0, window_bounds = array<i64: 2048, 128>}, {transform_indices = @transform_1, window_bounds = array<i64: 2048, 128>}, {transform_indices = @transform_2, window_bounds = array<i64: 1, 8, 128>}]} {
    %c0_i32 = arith.constant 0 : i32
    %0 = arith.cmpi eq, %arg1, %c0_i32 : i32
    %1 = arith.extui %0 : i1 to i32
    %c0_i32_0 = arith.constant 0 : i32
    %2 = arith.cmpi ne, %1, %c0_i32_0 : i32
    scf.if %2 {
      %cst = arith.constant 0.000000e+00 : f32
      %11 = vector.broadcast %cst : f32 to vector<1x8x128xf32>
      %c0 = arith.constant 0 : index
      %c0_5 = arith.constant 0 : index
      %c0_6 = arith.constant 0 : index
      %12 = vector.load %arg4[%c0, %c0_5, %c0_6] : memref<1x8x128xf32, #tpu.memory_space<vmem>>, vector<1x8x128xf32>
      tpu.vector_store %arg4[%c0, %c0_5, %c0_6], %11 {strides = array<i32>} : memref<1x8x128xf32, #tpu.memory_space<vmem>>, vector<1x8x128xf32>,
    } else {
    }
    %c1_i32 = arith.constant 1 : i32
    %3 = arith.muli %arg0, %c1_i32 : i32
    %4 = arith.addi %3, %arg1 : i32
    %c0_i32_1 = arith.constant 0 : i32
    %5 = arith.cmpi slt, %4, %c0_i32_1 : i32
    %6 = arith.extui %5 : i1 to i32
    %c0_i32_2 = arith.constant 0 : i32
    %7 = arith.cmpi ne, %6, %c0_i32_2 : i32
    scf.if %7 {
      %c0 = arith.constant 0 : index
      %c0_5 = arith.constant 0 : index
      %c0_6 = arith.constant 0 : index
      %11 = vector.load %arg4[%c0, %c0_5, %c0_6] : memref<1x8x128xf32, #tpu.memory_space<vmem>>, vector<1x8x128xf32>
      %cst = arith.constant 0.000000e+00 : f32
      %12 = vector.broadcast %cst : f32 to vector<8x128xf32>
      %c0_i32_7 = arith.constant 0 : i32
      %c4_i32 = arith.constant 4 : i32
      %13 = arith.addi %c0_i32_7, %c4_i32 : i32
      %c1_i32_8 = arith.constant 1 : i32
      %14 = scf.for %arg5 = %c0_i32_7 to %13 step %c1_i32_8 iter_args(%arg6 = %12) -> (vector<8x128xf32>)  : i32 {
        %c512_i32 = arith.constant 512 : i32
        %18 = arith.muli %arg5, %c512_i32 : i32
        %19 = tpu.assume_multiple %18, 512 : i32
        %20 = arith.index_cast %19 : i32 to index
        %c0_13 = arith.constant 0 : index
        %21 = vector.load %arg2[%20, %c0_13] : memref<2048x128xf32, #tpu.memory_space<vmem>>, vector<512x128xf32>
        %22 = arith.index_cast %19 : i32 to index
        %c0_14 = arith.constant 0 : index
        %23 = vector.load %arg3[%22, %c0_14] : memref<2048x128xf32, #tpu.memory_space<vmem>>, vector<512x128xf32>
        %24 = arith.subf %21, %23 : vector<512x128xf32>
        %25 = arith.mulf %24, %24 : vector<512x128xf32>
        %26 = vector.shape_cast %25 : vector<512x128xf32> to vector<64x8x128xf32>
        %cst_15 = arith.constant dense<0.000000e+00> : vector<8x128xf32>
        %27 = vector.multi_reduction <add>, %26, %cst_15 [0] : vector<64x8x128xf32> to vector<8x128xf32>
        %28 = arith.addf %arg6, %27 : vector<8x128xf32>
        scf.yield %28 : vector<8x128xf32>
      }
      %c4_i32_9 = arith.constant 4 : i32
      %15 = vector.shape_cast %14 : vector<8x128xf32> to vector<1x8x128xf32>
      %16 = arith.addf %11, %15 : vector<1x8x128xf32>
      %c0_10 = arith.constant 0 : index
      %c0_11 = arith.constant 0 : index
      %c0_12 = arith.constant 0 : index
      %17 = vector.load %arg4[%c0_10, %c0_11, %c0_12] : memref<1x8x128xf32, #tpu.memory_space<vmem>>, vector<1x8x128xf32>
      tpu.vector_store %arg4[%c0_10, %c0_11, %c0_12], %16 {strides = array<i32>} : memref<1x8x128xf32, #tpu.memory_space<vmem>>, vector<1x8x128xf32>,
    } else {
    }
    %c0_i32_3 = arith.constant 0 : i32
    %8 = arith.cmpi sge, %4, %c0_i32_3 : i32
    %9 = arith.extui %8 : i1 to i32
    %c0_i32_4 = arith.constant 0 : i32
    %10 = arith.cmpi ne, %9, %c0_i32_4 : i32
    scf.if %10 {
      %c0 = arith.constant 0 : index
      %c0_5 = arith.constant 0 : index
      %c0_6 = arith.constant 0 : index
      %11 = vector.load %arg4[%c0, %c0_5, %c0_6] : memref<1x8x128xf32, #tpu.memory_space<vmem>>, vector<1x8x128xf32>
      %cst = arith.constant 0.000000e+00 : f32
      %12 = vector.broadcast %cst : f32 to vector<8x128xf32>
      %c0_i32_7 = arith.constant 0 : i32
      %c4_i32 = arith.constant 4 : i32
      %13 = arith.addi %c0_i32_7, %c4_i32 : i32
      %c1_i32_8 = arith.constant 1 : i32
      %14 = scf.for %arg5 = %c0_i32_7 to %13 step %c1_i32_8 iter_args(%arg6 = %12) -> (vector<8x128xf32>)  : i32 {
        %c512_i32 = arith.constant 512 : i32
        %18 = arith.muli %arg5, %c512_i32 : i32
        %19 = tpu.assume_multiple %18, 512 : i32
        %20 = arith.index_cast %19 : i32 to index
        %c0_13 = arith.constant 0 : index
        %21 = vector.load %arg2[%20, %c0_13] : memref<2048x128xf32, #tpu.memory_space<vmem>>, vector<512x128xf32>
        %22 = arith.index_cast %19 : i32 to index
        %c0_14 = arith.constant 0 : index
        %23 = vector.load %arg3[%22, %c0_14] : memref<2048x128xf32, #tpu.memory_space<vmem>>, vector<512x128xf32>
        %24 = arith.subf %21, %23 : vector<512x128xf32>
        %25 = arith.mulf %24, %24 : vector<512x128xf32>
        %c2048_i32 = arith.constant 2048 : i32
        %26 = arith.muli %4, %c2048_i32 : i32
        %27 = arith.addi %26, %19 : i32
        %28 = tpu.iota {dimensions = array<i32: 0>} : vector<512x128xi32>
        %29 = vector.broadcast %27 : i32 to vector<512x128xi32>
        %30 = arith.addi %29, %28 : vector<512x128xi32>
        %c2005_i32 = arith.constant 2005 : i32
        %31 = vector.broadcast %c2005_i32 : i32 to vector<512x128xi32>
        %32 = arith.cmpi slt, %30, %31 : vector<512x128xi32>
        %cst_15 = arith.constant 0.000000e+00 : f32
        %33 = vector.broadcast %cst_15 : f32 to vector<512x128xf32>
        %34 = arith.select %32, %25, %33 : vector<512x128xi1>, vector<512x128xf32>
        %35 = vector.shape_cast %34 : vector<512x128xf32> to vector<64x8x128xf32>
        %cst_16 = arith.constant dense<0.000000e+00> : vector<8x128xf32>
        %36 = vector.multi_reduction <add>, %35, %cst_16 [0] : vector<64x8x128xf32> to vector<8x128xf32>
        %37 = arith.addf %arg6, %36 : vector<8x128xf32>
        scf.yield %37 : vector<8x128xf32>
      }
      %c4_i32_9 = arith.constant 4 : i32
      %15 = vector.shape_cast %14 : vector<8x128xf32> to vector<1x8x128xf32>
      %16 = arith.addf %11, %15 : vector<1x8x128xf32>
      %c0_10 = arith.constant 0 : index
      %c0_11 = arith.constant 0 : index
      %c0_12 = arith.constant 0 : index
      %17 = vector.load %arg4[%c0_10, %c0_11, %c0_12] : memref<1x8x128xf32, #tpu.memory_space<vmem>>, vector<1x8x128xf32>
      tpu.vector_store %arg4[%c0_10, %c0_11, %c0_12], %16 {strides = array<i32>} : memref<1x8x128xf32, #tpu.memory_space<vmem>>, vector<1x8x128xf32>,
    } else {
    }
    return
  }
  func.func @transform_0(%arg0: i32, %arg1: i32) -> (i32, i32) {
    %c1_i32 = arith.constant 1 : i32
    %0 = arith.muli %arg0, %c1_i32 : i32
    %1 = arith.addi %0, %arg1 : i32
    %c0_i32 = arith.constant 0 : i32
    %c0_i32_0 = arith.constant 0 : i32
    return %1, %c0_i32 : i32, i32
  }
  func.func @transform_1(%arg0: i32, %arg1: i32) -> (i32, i32) {
    %c1_i32 = arith.constant 1 : i32
    %0 = arith.muli %arg0, %c1_i32 : i32
    %1 = arith.addi %0, %arg1 : i32
    %c0_i32 = arith.constant 0 : i32
    %c0_i32_0 = arith.constant 0 : i32
    return %1, %c0_i32 : i32, i32
  }
  func.func @transform_2(%arg0: i32, %arg1: i32) -> (i32, i32, i32) {
    %c0_i32 = arith.constant 0 : i32
    %c0_i32_0 = arith.constant 0 : i32
    %c0_i32_1 = arith.constant 0 : i32
    return %arg0, %c0_i32, %c0_i32_0 : i32, i32, i32
  }
}

</mosaic_0001>

<llo_original>
// kernel: tpu_custom_call.1
$region0: #{tpu_custom_call.1}
  #allocation0 [shape = 'u32[]', space=smem, size = 0x4, offset = 0x4, fixed_abs, tag = 'smem constant byte address 0x4 - core index']
  #allocation1 [shape = 'u32[144,128]{1,0:T(1,128)}', space=vmem, size = 0x12000, scoped, tag = 'internal scratch']
  %s0 = inlined_call_operand.hbm [shape: f32[2005,128], index: 0, kind: input, shape index: {}]
  %s1 = inlined_call_operand.hbm [shape: f32[2005,128], index: 1, kind: input, shape index: {}]
  %s2 = inlined_call_operand.hbm [shape: f32[1,8,128], index: 2, kind: output, shape index: {}]
  %s3 = sld [smem:[#allocation0]]
  $region52: #{tpu_custom_call.1} parent=0
    _
  %s5 = ssub.s32 1, %s3
  %s6 = scalar_select 0, %s5, %s3
  $region1: #{tpu_custom_call.1} parent=0
    #allocation2 [shape = 'u8[1048576]{0}', space=vmem, size = 0x100000, scoped, tag = 'input window, operand 0, single buffered']
    #allocation3 [shape = 's32[1]{0}', space=sflag, size = 0x4, scoped, tag = 'scoped memory for tpu_custom_call.1']
    #allocation4 [shape = 's32[1]{0}', space=sflag, size = 0x4, scoped, tag = 'scoped memory for tpu_custom_call.1']
    #allocation5 [shape = 'u8[1048576]{0}', space=vmem, size = 0x100000, scoped, tag = 'input window, operand 1, single buffered']
    #allocation6 [shape = 's32[1]{0}', space=sflag, size = 0x4, scoped, tag = 'scoped memory for tpu_custom_call.1']
    #allocation7 [shape = 'u8[4096]{0}', space=vmem, size = 0x1000, scoped, tag = 'output window, operand 0, single buffered']
    %7 = vsyncpa [#allocation3], 0
    %8 = vsyncpa [#allocation6], 0
    %9 = vsyncpa [#allocation4], 0
    // Predicated region
    $region2: #{tpu_custom_call.1} parent=1 // pred_check
      _
    $region3: #{tpu_custom_call.1} parent=1 // pred_check_branch
      %11 = sbr.rel (0) target = $region5
    $region4: #{tpu_custom_call.1} parent=1 // pred_region
      %s12 = sadd.s32 0, 0
      %s13 = smul.u32 256, %s12
      %s14 = ssub.s32 251, %s13
      %s15 = smul.u32 128, %s14
      %s17 = ssub.s32 32768, %s15
      %18 = vsyncadd [#allocation3], %s17
      %p19 = scmp.ne.s32.totalorder 0, %s15
      %s20 = smul.addr %s13, 128
      %s21 = scalar_lea.hbm %s0, %s20
      %s22 = smul.u32 8, %s14
      %s23 = sshll.u32 [#allocation2], 4
      %s24 = int_to_ptr.vmem [resolvable:$true] %s23
      %s25 = sshll.u32 %s22, 4
      %29 = dma.hbm_to_vmem [thread:$0]  (%p19), %s21, %s25, %s24, [#allocation3], 128, 128, 8
    $region5: #{tpu_custom_call.1} parent=1 // pred_fallthru
      _
    // Predicated region
    $region6: #{tpu_custom_call.1} parent=1 // pred_check
      _
    $region7: #{tpu_custom_call.1} parent=1 // pred_check_branch
      %31 = sbr.rel (0) target = $region9
    $region8: #{tpu_custom_call.1} parent=1 // pred_region
      %s32 = sadd.s32 0, 0
      %s33 = smul.u32 256, %s32
      %s34 = ssub.s32 251, %s33
      %s35 = smul.u32 128, %s34
      %s37 = ssub.s32 32768, %s35
      %38 = vsyncadd [#allocation6], %s37
      %p39 = scmp.ne.s32.totalorder 0, %s35
      %s40 = smul.addr %s33, 128
      %s41 = scalar_lea.hbm %s1, %s40
      %s42 = smul.u32 8, %s34
      %s43 = sshll.u32 [#allocation5], 4
      %s44 = int_to_ptr.vmem [resolvable:$true] %s43
      %s45 = sshll.u32 %s42, 4
      %49 = dma.hbm_to_vmem [thread:$0]  (%p39), %s41, %s45, %s44, [#allocation6], 128, 128, 8
    $region9: #{tpu_custom_call.1} parent=1 // pred_fallthru
      _
    // Predicated region
    $region10: #{tpu_custom_call.1} parent=1 // pred_check
      _
    $region11: #{tpu_custom_call.1} parent=1 // pred_check_branch
      %51 = sbr.rel (0) target = $region13
    $region12: #{tpu_custom_call.1} parent=1 // pred_region
      %52 = dma.done [#allocation3], 32768
    $region13: #{tpu_custom_call.1} parent=1 // pred_fallthru
      _
    // Predicated region
    $region14: #{tpu_custom_call.1} parent=1 // pred_check
      _
    $region15: #{tpu_custom_call.1} parent=1 // pred_check_branch
      %54 = sbr.rel (0) target = $region17
    $region16: #{tpu_custom_call.1} parent=1 // pred_region
      %55 = dma.done [#allocation6], 32768
    $region17: #{tpu_custom_call.1} parent=1 // pred_fallthru
      _
    %s56 = sadd.s32 0, 0
    %s57 = smul.u32 256, %s56
    %s58 = ssub.s32 251, %s57
    %s59 = smul.u32 128, %s58
    %s60 = sadd.s32 0, 0
    %s61 = smul.u32 256, %s60
    %s62 = ssub.s32 251, %s61
    %s63 = smul.u32 128, %s62
    %p64 = scmp.eq.s32.totalorder 0, 0
    // Predicated region
    $region18: #{tpu_custom_call.1} parent=1 // pred_check
      %p65 = pneg %p64
    $region19: #{tpu_custom_call.1} parent=1 // pred_check_branch
      %67 = sbr.rel (%p65) target = $region21
    $region20: #{tpu_custom_call.1} parent=1 // pred_region
      %68 = vst [vmem:[#allocation7] sm:$0xff] 0.0
    $region21: #{tpu_custom_call.1} parent=1 // pred_fallthru
      _
    %s69 = sadd.s32 0, 0
    %p70 = scmp.lt.s32.totalorder %s69, 0
    // Predicated region
    $region22: #{tpu_custom_call.1} parent=1 // pred_check
      %p71 = pneg %p70
    $region23: #{tpu_custom_call.1} parent=1 // pred_check_branch
      %73 = sbr.rel (%p71) target = $region25
    $region24: #{tpu_custom_call.1} parent=1 // pred_region
      %v74 = vld [vmem:[#allocation7] sm:$0xff]
      loop: start=0, step=1, limit=4
      $region26: #{tpu_custom_call.1} parent=24 // loop_pre_header
        _
      $region27: #{tpu_custom_call.1} parent=24 // loop_header
        %s76 = sphi 0, %s80
        %p77 = scmp.ge.s32.totalorder %s76, 4
        %v81 = vphi 0.0, %v404
      $region28: #{tpu_custom_call.1} parent=24 // loop_header_branch
        %79 = sbr.rel (%p77) target = $region32
      $region29: #{tpu_custom_call.1} parent=24 // loop_body
        %s82 = smul.u32 %s76, 512
        %s83 = scalar_lea.vmem [#allocation2], %s82
        %v84 = vld [vmem:[%s83] sm:$0xff]
        %v85 = vld [vmem:[%s83 + $0x8] sm:$0xff]
        %v86 = vld [vmem:[%s83 + $0x10] sm:$0xff]
        %v87 = vld [vmem:[%s83 + $0x18] sm:$0xff]
        %v88 = vld [vmem:[%s83 + $0x20] sm:$0xff]
        %v89 = vld [vmem:[%s83 + $0x28] sm:$0xff]
        %v90 = vld [vmem:[%s83 + $0x30] sm:$0xff]
        %v91 = vld [vmem:[%s83 + $0x38] sm:$0xff]
        %v92 = vld [vmem:[%s83 + $0x40] sm:$0xff]
        %v93 = vld [vmem:[%s83 + $0x48] sm:$0xff]
        %v94 = vld [vmem:[%s83 + $0x50] sm:$0xff]
        %v95 = vld [vmem:[%s83 + $0x58] sm:$0xff]
        %v96 = vld [vmem:[%s83 + $0x60] sm:$0xff]
        %v97 = vld [vmem:[%s83 + $0x68] sm:$0xff]
        %v98 = vld [vmem:[%s83 + $0x70] sm:$0xff]
        %v99 = vld [vmem:[%s83 + $0x78] sm:$0xff]
        %v100 = vld [vmem:[%s83 + $0x80] sm:$0xff]
        %v101 = vld [vmem:[%s83 + $0x88] sm:$0xff]
        %v102 = vld [vmem:[%s83 + $0x90] sm:$0xff]
        %v103 = vld [vmem:[%s83 + $0x98] sm:$0xff]
        %v104 = vld [vmem:[%s83 + $0xa0] sm:$0xff]
        %v105 = vld [vmem:[%s83 + $0xa8] sm:$0xff]
        %v106 = vld [vmem:[%s83 + $0xb0] sm:$0xff]
        %v107 = vld [vmem:[%s83 + $0xb8] sm:$0xff]
        %v108 = vld [vmem:[%s83 + $0xc0] sm:$0xff]
        %v109 = vld [vmem:[%s83 + $0xc8] sm:$0xff]
        %v110 = vld [vmem:[%s83 + $0xd0] sm:$0xff]
        %v111 = vld [vmem:[%s83 + $0xd8] sm:$0xff]
        %v112 = vld [vmem:[%s83 + $0xe0] sm:$0xff]
        %v113 = vld [vmem:[%s83 + $0xe8] sm:$0xff]
        %v114 = vld [vmem:[%s83 + $0xf0] sm:$0xff]
        %v115 = vld [vmem:[%s83 + $0xf8] sm:$0xff]
        %v116 = vld [vmem:[%s83 + $0x100] sm:$0xff]
        %v117 = vld [vmem:[%s83 + $0x108] sm:$0xff]
        %v118 = vld [vmem:[%s83 + $0x110] sm:$0xff]
        %v119 = vld [vmem:[%s83 + $0x118] sm:$0xff]
        %v120 = vld [vmem:[%s83 + $0x120] sm:$0xff]
        %v121 = vld [vmem:[%s83 + $0x128] sm:$0xff]
        %v122 = vld [vmem:[%s83 + $0x130] sm:$0xff]
        %v123 = vld [vmem:[%s83 + $0x138] sm:$0xff]
        %v124 = vld [vmem:[%s83 + $0x140] sm:$0xff]
        %v125 = vld [vmem:[%s83 + $0x148] sm:$0xff]
        %v126 = vld [vmem:[%s83 + $0x150] sm:$0xff]
        %v127 = vld [vmem:[%s83 + $0x158] sm:$0xff]
        %v128 = vld [vmem:[%s83 + $0x160] sm:$0xff]
        %v129 = vld [vmem:[%s83 + $0x168] sm:$0xff]
        %v130 = vld [vmem:[%s83 + $0x170] sm:$0xff]
        %v131 = vld [vmem:[%s83 + $0x178] sm:$0xff]
        %v132 = vld [vmem:[%s83 + $0x180] sm:$0xff]
        %v133 = vld [vmem:[%s83 + $0x188] sm:$0xff]
        %v134 = vld [vmem:[%s83 + $0x190] sm:$0xff]
        %v135 = vld [vmem:[%s83 + $0x198] sm:$0xff]
        %v136 = vld [vmem:[%s83 + $0x1a0] sm:$0xff]
        %v137 = vld [vmem:[%s83 + $0x1a8] sm:$0xff]
        %v138 = vld [vmem:[%s83 + $0x1b0] sm:$0xff]
        %v139 = vld [vmem:[%s83 + $0x1b8] sm:$0xff]
        %v140 = vld [vmem:[%s83 + $0x1c0] sm:$0xff]
        %v141 = vld [vmem:[%s83 + $0x1c8] sm:$0xff]
        %v142 = vld [vmem:[%s83 + $0x1d0] sm:$0xff]
        %v143 = vld [vmem:[%s83 + $0x1d8] sm:$0xff]
        %v144 = vld [vmem:[%s83 + $0x1e0] sm:$0xff]
        %v145 = vld [vmem:[%s83 + $0x1e8] sm:$0xff]
        %v146 = vld [vmem:[%s83 + $0x1f0] sm:$0xff]
        %v147 = vld [vmem:[%s83 + $0x1f8] sm:$0xff]
        %s148 = scalar_lea.vmem [#allocation5], %s82
        %v149 = vld [vmem:[%s148] sm:$0xff]
        %v150 = vld [vmem:[%s148 + $0x8] sm:$0xff]
        %v151 = vld [vmem:[%s148 + $0x10] sm:$0xff]
        %v152 = vld [vmem:[%s148 + $0x18] sm:$0xff]
        %v153 = vld [vmem:[%s148 + $0x20] sm:$0xff]
        %v154 = vld [vmem:[%s148 + $0x28] sm:$0xff]
        %v155 = vld [vmem:[%s148 + $0x30] sm:$0xff]
        %v156 = vld [vmem:[%s148 + $0x38] sm:$0xff]
        %v157 = vld [vmem:[%s148 + $0x40] sm:$0xff]
        %v158 = vld [vmem:[%s148 + $0x48] sm:$0xff]
        %v159 = vld [vmem:[%s148 + $0x50] sm:$0xff]
        %v160 = vld [vmem:[%s148 + $0x58] sm:$0xff]
        %v161 = vld [vmem:[%s148 + $0x60] sm:$0xff]
        %v162 = vld [vmem:[%s148 + $0x68] sm:$0xff]
        %v163 = vld [vmem:[%s148 + $0x70] sm:$0xff]
        %v164 = vld [vmem:[%s148 + $0x78] sm:$0xff]
        %v165 = vld [vmem:[%s148 + $0x80] sm:$0xff]
        %v166 = vld [vmem:[%s148 + $0x88] sm:$0xff]
        %v167 = vld [vmem:[%s148 + $0x90] sm:$0xff]
        %v168 = vld [vmem:[%s148 + $0x98] sm:$0xff]
        %v169 = vld [vmem:[%s148 + $0xa0] sm:$0xff]
        %v170 = vld [vmem:[%s148 + $0xa8] sm:$0xff]
        %v171 = vld [vmem:[%s148 + $0xb0] sm:$0xff]
        %v172 = vld [vmem:[%s148 + $0xb8] sm:$0xff]
        %v173 = vld [vmem:[%s148 + $0xc0] sm:$0xff]
        %v174 = vld [vmem:[%s148 + $0xc8] sm:$0xff]
        %v175 = vld [vmem:[%s148 + $0xd0] sm:$0xff]
        %v176 = vld [vmem:[%s148 + $0xd8] sm:$0xff]
        %v177 = vld [vmem:[%s148 + $0xe0] sm:$0xff]
        %v178 = vld [vmem:[%s148 + $0xe8] sm:$0xff]
        %v179 = vld [vmem:[%s148 + $0xf0] sm:$0xff]
        %v180 = vld [vmem:[%s148 + $0xf8] sm:$0xff]
        %v181 = vld [vmem:[%s148 + $0x100] sm:$0xff]
        %v182 = vld [vmem:[%s148 + $0x108] sm:$0xff]
        %v183 = vld [vmem:[%s148 + $0x110] sm:$0xff]
        %v184 = vld [vmem:[%s148 + $0x118] sm:$0xff]
        %v185 = vld [vmem:[%s148 + $0x120] sm:$0xff]
        %v186 = vld [vmem:[%s148 + $0x128] sm:$0xff]
        %v187 = vld [vmem:[%s148 + $0x130] sm:$0xff]
        %v188 = vld [vmem:[%s148 + $0x138] sm:$0xff]
        %v189 = vld [vmem:[%s148 + $0x140] sm:$0xff]
        %v190 = vld [vmem:[%s148 + $0x148] sm:$0xff]
        %v191 = vld [vmem:[%s148 + $0x150] sm:$0xff]
        %v192 = vld [vmem:[%s148 + $0x158] sm:$0xff]
        %v193 = vld [vmem:[%s148 + $0x160] sm:$0xff]
        %v194 = vld [vmem:[%s148 + $0x168] sm:$0xff]
        %v195 = vld [vmem:[%s148 + $0x170] sm:$0xff]
        %v196 = vld [vmem:[%s148 + $0x178] sm:$0xff]
        %v197 = vld [vmem:[%s148 + $0x180] sm:$0xff]
        %v198 = vld [vmem:[%s148 + $0x188] sm:$0xff]
        %v199 = vld [vmem:[%s148 + $0x190] sm:$0xff]
        %v200 = vld [vmem:[%s148 + $0x198] sm:$0xff]
        %v201 = vld [vmem:[%s148 + $0x1a0] sm:$0xff]
        %v202 = vld [vmem:[%s148 + $0x1a8] sm:$0xff]
        %v203 = vld [vmem:[%s148 + $0x1b0] sm:$0xff]
        %v204 = vld [vmem:[%s148 + $0x1b8] sm:$0xff]
        %v205 = vld [vmem:[%s148 + $0x1c0] sm:$0xff]
        %v206 = vld [vmem:[%s148 + $0x1c8] sm:$0xff]
        %v207 = vld [vmem:[%s148 + $0x1d0] sm:$0xff]
        %v208 = vld [vmem:[%s148 + $0x1d8] sm:$0xff]
        %v209 = vld [vmem:[%s148 + $0x1e0] sm:$0xff]
        %v210 = vld [vmem:[%s148 + $0x1e8] sm:$0xff]
        %v211 = vld [vmem:[%s148 + $0x1f0] sm:$0xff]
        %v212 = vld [vmem:[%s148 + $0x1f8] sm:$0xff]
        %v213 = vsub.f32 %v84, %v149
        %v214 = vsub.f32 %v85, %v150
        %v215 = vsub.f32 %v86, %v151
        %v216 = vsub.f32 %v87, %v152
        %v217 = vsub.f32 %v88, %v153
        %v218 = vsub.f32 %v89, %v154
        %v219 = vsub.f32 %v90, %v155
        %v220 = vsub.f32 %v91, %v156
        %v221 = vsub.f32 %v92, %v157
        %v222 = vsub.f32 %v93, %v158
        %v223 = vsub.f32 %v94, %v159
        %v224 = vsub.f32 %v95, %v160
        %v225 = vsub.f32 %v96, %v161
        %v226 = vsub.f32 %v97, %v162
        %v227 = vsub.f32 %v98, %v163
        %v228 = vsub.f32 %v99, %v164
        %v229 = vsub.f32 %v100, %v165
        %v230 = vsub.f32 %v101, %v166
        %v231 = vsub.f32 %v102, %v167
        %v232 = vsub.f32 %v103, %v168
        %v233 = vsub.f32 %v104, %v169
        %v234 = vsub.f32 %v105, %v170
        %v235 = vsub.f32 %v106, %v171
        %v236 = vsub.f32 %v107, %v172
        %v237 = vsub.f32 %v108, %v173
        %v238 = vsub.f32 %v109, %v174
        %v239 = vsub.f32 %v110, %v175
        %v240 = vsub.f32 %v111, %v176
        %v241 = vsub.f32 %v112, %v177
        %v242 = vsub.f32 %v113, %v178
        %v243 = vsub.f32 %v114, %v179
        %v244 = vsub.f32 %v115, %v180
        %v245 = vsub.f32 %v116, %v181
        %v246 = vsub.f32 %v117, %v182
        %v247 = vsub.f32 %v118, %v183
        %v248 = vsub.f32 %v119, %v184
        %v249 = vsub.f32 %v120, %v185
        %v250 = vsub.f32 %v121, %v186
        %v251 = vsub.f32 %v122, %v187
        %v252 = vsub.f32 %v123, %v188
        %v253 = vsub.f32 %v124, %v189
        %v254 = vsub.f32 %v125, %v190
        %v255 = vsub.f32 %v126, %v191
        %v256 = vsub.f32 %v127, %v192
        %v257 = vsub.f32 %v128, %v193
        %v258 = vsub.f32 %v129, %v194
        %v259 = vsub.f32 %v130, %v195
        %v260 = vsub.f32 %v131, %v196
        %v261 = vsub.f32 %v132, %v197
        %v262 = vsub.f32 %v133, %v198
        %v263 = vsub.f32 %v134, %v199
        %v264 = vsub.f32 %v135, %v200
        %v265 = vsub.f32 %v136, %v201
        %v266 = vsub.f32 %v137, %v202
        %v267 = vsub.f32 %v138, %v203
        %v268 = vsub.f32 %v139, %v204
        %v269 = vsub.f32 %v140, %v205
        %v270 = vsub.f32 %v141, %v206
        %v271 = vsub.f32 %v142, %v207
        %v272 = vsub.f32 %v143, %v208
        %v273 = vsub.f32 %v144, %v209
        %v274 = vsub.f32 %v145, %v210
        %v275 = vsub.f32 %v146, %v211
        %v276 = vsub.f32 %v147, %v212
        %v277 = vmul.f32 %v213, %v213
        %v278 = vmul.f32 %v214, %v214
        %v279 = vmul.f32 %v215, %v215
        %v280 = vmul.f32 %v216, %v216
        %v281 = vmul.f32 %v217, %v217
        %v282 = vmul.f32 %v218, %v218
        %v283 = vmul.f32 %v219, %v219
        %v284 = vmul.f32 %v220, %v220
        %v285 = vmul.f32 %v221, %v221
        %v286 = vmul.f32 %v222, %v222
        %v287 = vmul.f32 %v223, %v223
        %v288 = vmul.f32 %v224, %v224
        %v289 = vmul.f32 %v225, %v225
        %v290 = vmul.f32 %v226, %v226
        %v291 = vmul.f32 %v227, %v227
        %v292 = vmul.f32 %v228, %v228
        %v293 = vmul.f32 %v229, %v229
        %v294 = vmul.f32 %v230, %v230
        %v295 = vmul.f32 %v231, %v231
        %v296 = vmul.f32 %v232, %v232
        %v297 = vmul.f32 %v233, %v233
        %v298 = vmul.f32 %v234, %v234
        %v299 = vmul.f32 %v235, %v235
        %v300 = vmul.f32 %v236, %v236
        %v301 = vmul.f32 %v237, %v237
        %v302 = vmul.f32 %v238, %v238
        %v303 = vmul.f32 %v239, %v239
        %v304 = vmul.f32 %v240, %v240
        %v305 = vmul.f32 %v241, %v241
        %v306 = vmul.f32 %v242, %v242
        %v307 = vmul.f32 %v243, %v243
        %v308 = vmul.f32 %v244, %v244
        %v309 = vmul.f32 %v245, %v245
        %v310 = vmul.f32 %v246, %v246
        %v311 = vmul.f32 %v247, %v247
        %v312 = vmul.f32 %v248, %v248
        %v313 = vmul.f32 %v249, %v249
        %v314 = vmul.f32 %v250, %v250
        %v315 = vmul.f32 %v251, %v251
        %v316 = vmul.f32 %v252, %v252
        %v317 = vmul.f32 %v253, %v253
        %v318 = vmul.f32 %v254, %v254
        %v319 = vmul.f32 %v255, %v255
        %v320 = vmul.f32 %v256, %v256
        %v321 = vmul.f32 %v257, %v257
        %v322 = vmul.f32 %v258, %v258
        %v323 = vmul.f32 %v259, %v259
        %v324 = vmul.f32 %v260, %v260
        %v325 = vmul.f32 %v261, %v261
        %v326 = vmul.f32 %v262, %v262
        %v327 = vmul.f32 %v263, %v263
        %v328 = vmul.f32 %v264, %v264
        %v329 = vmul.f32 %v265, %v265
        %v330 = vmul.f32 %v266, %v266
        %v331 = vmul.f32 %v267, %v267
        %v332 = vmul.f32 %v268, %v268
        %v333 = vmul.f32 %v269, %v269
        %v334 = vmul.f32 %v270, %v270
        %v335 = vmul.f32 %v271, %v271
        %v336 = vmul.f32 %v272, %v272
        %v337 = vmul.f32 %v273, %v273
        %v338 = vmul.f32 %v274, %v274
        %v339 = vmul.f32 %v275, %v275
        %v340 = vmul.f32 %v276, %v276
        %v341 = vadd.f32 %v277, %v278
        %v342 = vadd.f32 %v341, %v279
        %v343 = vadd.f32 %v342, %v280
        %v344 = vadd.f32 %v343, %v281
        %v345 = vadd.f32 %v344, %v282
        %v346 = vadd.f32 %v345, %v283
        %v347 = vadd.f32 %v346, %v284
        %v348 = vadd.f32 %v347, %v285
        %v349 = vadd.f32 %v348, %v286
        %v350 = vadd.f32 %v349, %v287
        %v351 = vadd.f32 %v350, %v288
        %v352 = vadd.f32 %v351, %v289
        %v353 = vadd.f32 %v352, %v290
        %v354 = vadd.f32 %v353, %v291
        %v355 = vadd.f32 %v354, %v292
        %v356 = vadd.f32 %v355, %v293
        %v357 = vadd.f32 %v356, %v294
        %v358 = vadd.f32 %v357, %v295
        %v359 = vadd.f32 %v358, %v296
        %v360 = vadd.f32 %v359, %v297
        %v361 = vadd.f32 %v360, %v298
        %v362 = vadd.f32 %v361, %v299
        %v363 = vadd.f32 %v362, %v300
        %v364 = vadd.f32 %v363, %v301
        %v365 = vadd.f32 %v364, %v302
        %v366 = vadd.f32 %v365, %v303
        %v367 = vadd.f32 %v366, %v304
        %v368 = vadd.f32 %v367, %v305
        %v369 = vadd.f32 %v368, %v306
        %v370 = vadd.f32 %v369, %v307
        %v371 = vadd.f32 %v370, %v308
        %v372 = vadd.f32 %v371, %v309
        %v373 = vadd.f32 %v372, %v310
        %v374 = vadd.f32 %v373, %v311
        %v375 = vadd.f32 %v374, %v312
        %v376 = vadd.f32 %v375, %v313
        %v377 = vadd.f32 %v376, %v314
        %v378 = vadd.f32 %v377, %v315
        %v379 = vadd.f32 %v378, %v316
        %v380 = vadd.f32 %v379, %v317
        %v381 = vadd.f32 %v380, %v318
        %v382 = vadd.f32 %v381, %v319
        %v383 = vadd.f32 %v382, %v320
        %v384 = vadd.f32 %v383, %v321
        %v385 = vadd.f32 %v384, %v322
        %v386 = vadd.f32 %v385, %v323
        %v387 = vadd.f32 %v386, %v324
        %v388 = vadd.f32 %v387, %v325
        %v389 = vadd.f32 %v388, %v326
        %v390 = vadd.f32 %v389, %v327
        %v391 = vadd.f32 %v390, %v328
        %v392 = vadd.f32 %v391, %v329
        %v393 = vadd.f32 %v392, %v330
        %v394 = vadd.f32 %v393, %v331
        %v395 = vadd.f32 %v394, %v332
        %v396 = vadd.f32 %v395, %v333
        %v397 = vadd.f32 %v396, %v334
        %v398 = vadd.f32 %v397, %v335
        %v399 = vadd.f32 %v398, %v336
        %v400 = vadd.f32 %v399, %v337
        %v401 = vadd.f32 %v400, %v338
        %v402 = vadd.f32 %v401, %v339
        %v403 = vadd.f32 %v402, %v340
        %v404 = vadd.f32 %v81, %v403
      $region30: #{tpu_custom_call.1} parent=24 // loop_footer
        %s80 = sadd.s32 1, %s76
      $region31: #{tpu_custom_call.1} parent=24 // loop_footer_branch
        %75 = sbr.rel target = $region27
      $region32: #{tpu_custom_call.1} parent=24 // loop_exit
        _
      %v405 = vadd.f32 %v74, %v81
      %406 = vst [vmem:[#allocation7] sm:$0xff] %v405
    $region25: #{tpu_custom_call.1} parent=1 // pred_fallthru
      _
    %p407 = scmp.ge.s32.totalorder %s69, 0
    // Predicated region
    $region33: #{tpu_custom_call.1} parent=1 // pred_check
      %p408 = pneg %p407
    $region34: #{tpu_custom_call.1} parent=1 // pred_check_branch
      %410 = sbr.rel (%p408) target = $region36
    $region35: #{tpu_custom_call.1} parent=1 // pred_region
      %v411 = vld [vmem:[#allocation7] sm:$0xff]
      loop: start=0, step=1, limit=4
      $region37: #{tpu_custom_call.1} parent=35 // loop_pre_header
        _
      $region38: #{tpu_custom_call.1} parent=35 // loop_header
        %s413 = sphi 0, %s417
        %p414 = scmp.ge.s32.totalorder %s413, 4
        %v418 = vphi 0.0, %v1001
      $region39: #{tpu_custom_call.1} parent=35 // loop_header_branch
        %416 = sbr.rel (%p414) target = $region43
      $region40: #{tpu_custom_call.1} parent=35 // loop_body
        %s419 = smul.u32 %s413, 512
        %s420 = scalar_lea.vmem [#allocation2], %s419
        %v421 = vld [vmem:[%s420] sm:$0xff]
        %v422 = vld [vmem:[%s420 + $0x8] sm:$0xff]
        %v423 = vld [vmem:[%s420 + $0x10] sm:$0xff]
        %v424 = vld [vmem:[%s420 + $0x18] sm:$0xff]
        %v425 = vld [vmem:[%s420 + $0x20] sm:$0xff]
        %v426 = vld [vmem:[%s420 + $0x28] sm:$0xff]
        %v427 = vld [vmem:[%s420 + $0x30] sm:$0xff]
        %v428 = vld [vmem:[%s420 + $0x38] sm:$0xff]
        %v429 = vld [vmem:[%s420 + $0x40] sm:$0xff]
        %v430 = vld [vmem:[%s420 + $0x48] sm:$0xff]
        %v431 = vld [vmem:[%s420 + $0x50] sm:$0xff]
        %v432 = vld [vmem:[%s420 + $0x58] sm:$0xff]
        %v433 = vld [vmem:[%s420 + $0x60] sm:$0xff]
        %v434 = vld [vmem:[%s420 + $0x68] sm:$0xff]
        %v435 = vld [vmem:[%s420 + $0x70] sm:$0xff]
        %v436 = vld [vmem:[%s420 + $0x78] sm:$0xff]
        %v437 = vld [vmem:[%s420 + $0x80] sm:$0xff]
        %v438 = vld [vmem:[%s420 + $0x88] sm:$0xff]
        %v439 = vld [vmem:[%s420 + $0x90] sm:$0xff]
        %v440 = vld [vmem:[%s420 + $0x98] sm:$0xff]
        %v441 = vld [vmem:[%s420 + $0xa0] sm:$0xff]
        %v442 = vld [vmem:[%s420 + $0xa8] sm:$0xff]
        %v443 = vld [vmem:[%s420 + $0xb0] sm:$0xff]
        %v444 = vld [vmem:[%s420 + $0xb8] sm:$0xff]
        %v445 = vld [vmem:[%s420 + $0xc0] sm:$0xff]
        %v446 = vld [vmem:[%s420 + $0xc8] sm:$0xff]
        %v447 = vld [vmem:[%s420 + $0xd0] sm:$0xff]
        %v448 = vld [vmem:[%s420 + $0xd8] sm:$0xff]
        %v449 = vld [vmem:[%s420 + $0xe0] sm:$0xff]
        %v450 = vld [vmem:[%s420 + $0xe8] sm:$0xff]
        %v451 = vld [vmem:[%s420 + $0xf0] sm:$0xff]
        %v452 = vld [vmem:[%s420 + $0xf8] sm:$0xff]
        %v453 = vld [vmem:[%s420 + $0x100] sm:$0xff]
        %v454 = vld [vmem:[%s420 + $0x108] sm:$0xff]
        %v455 = vld [vmem:[%s420 + $0x110] sm:$0xff]
        %v456 = vld [vmem:[%s420 + $0x118] sm:$0xff]
        %v457 = vld [vmem:[%s420 + $0x120] sm:$0xff]
        %v458 = vld [vmem:[%s420 + $0x128] sm:$0xff]
        %v459 = vld [vmem:[%s420 + $0x130] sm:$0xff]
        %v460 = vld [vmem:[%s420 + $0x138] sm:$0xff]
        %v461 = vld [vmem:[%s420 + $0x140] sm:$0xff]
        %v462 = vld [vmem:[%s420 + $0x148] sm:$0xff]
        %v463 = vld [vmem:[%s420 + $0x150] sm:$0xff]
        %v464 = vld [vmem:[%s420 + $0x158] sm:$0xff]
        %v465 = vld [vmem:[%s420 + $0x160] sm:$0xff]
        %v466 = vld [vmem:[%s420 + $0x168] sm:$0xff]
        %v467 = vld [vmem:[%s420 + $0x170] sm:$0xff]
        %v468 = vld [vmem:[%s420 + $0x178] sm:$0xff]
        %v469 = vld [vmem:[%s420 + $0x180] sm:$0xff]
        %v470 = vld [vmem:[%s420 + $0x188] sm:$0xff]
        %v471 = vld [vmem:[%s420 + $0x190] sm:$0xff]
        %v472 = vld [vmem:[%s420 + $0x198] sm:$0xff]
        %v473 = vld [vmem:[%s420 + $0x1a0] sm:$0xff]
        %v474 = vld [vmem:[%s420 + $0x1a8] sm:$0xff]
        %v475 = vld [vmem:[%s420 + $0x1b0] sm:$0xff]
        %v476 = vld [vmem:[%s420 + $0x1b8] sm:$0xff]
        %v477 = vld [vmem:[%s420 + $0x1c0] sm:$0xff]
        %v478 = vld [vmem:[%s420 + $0x1c8] sm:$0xff]
        %v479 = vld [vmem:[%s420 + $0x1d0] sm:$0xff]
        %v480 = vld [vmem:[%s420 + $0x1d8] sm:$0xff]
        %v481 = vld [vmem:[%s420 + $0x1e0] sm:$0xff]
        %v482 = vld [vmem:[%s420 + $0x1e8] sm:$0xff]
        %v483 = vld [vmem:[%s420 + $0x1f0] sm:$0xff]
        %v484 = vld [vmem:[%s420 + $0x1f8] sm:$0xff]
        %s485 = scalar_lea.vmem [#allocation5], %s419
        %v486 = vld [vmem:[%s485] sm:$0xff]
        %v487 = vld [vmem:[%s485 + $0x8] sm:$0xff]
        %v488 = vld [vmem:[%s485 + $0x10] sm:$0xff]
        %v489 = vld [vmem:[%s485 + $0x18] sm:$0xff]
        %v490 = vld [vmem:[%s485 + $0x20] sm:$0xff]
        %v491 = vld [vmem:[%s485 + $0x28] sm:$0xff]
        %v492 = vld [vmem:[%s485 + $0x30] sm:$0xff]
        %v493 = vld [vmem:[%s485 + $0x38] sm:$0xff]
        %v494 = vld [vmem:[%s485 + $0x40] sm:$0xff]
        %v495 = vld [vmem:[%s485 + $0x48] sm:$0xff]
        %v496 = vld [vmem:[%s485 + $0x50] sm:$0xff]
        %v497 = vld [vmem:[%s485 + $0x58] sm:$0xff]
        %v498 = vld [vmem:[%s485 + $0x60] sm:$0xff]
        %v499 = vld [vmem:[%s485 + $0x68] sm:$0xff]
        %v500 = vld [vmem:[%s485 + $0x70] sm:$0xff]
        %v501 = vld [vmem:[%s485 + $0x78] sm:$0xff]
        %v502 = vld [vmem:[%s485 + $0x80] sm:$0xff]
        %v503 = vld [vmem:[%s485 + $0x88] sm:$0xff]
        %v504 = vld [vmem:[%s485 + $0x90] sm:$0xff]
        %v505 = vld [vmem:[%s485 + $0x98] sm:$0xff]
        %v506 = vld [vmem:[%s485 + $0xa0] sm:$0xff]
        %v507 = vld [vmem:[%s485 + $0xa8] sm:$0xff]
        %v508 = vld [vmem:[%s485 + $0xb0] sm:$0xff]
        %v509 = vld [vmem:[%s485 + $0xb8] sm:$0xff]
        %v510 = vld [vmem:[%s485 + $0xc0] sm:$0xff]
        %v511 = vld [vmem:[%s485 + $0xc8] sm:$0xff]
        %v512 = vld [vmem:[%s485 + $0xd0] sm:$0xff]
        %v513 = vld [vmem:[%s485 + $0xd8] sm:$0xff]
        %v514 = vld [vmem:[%s485 + $0xe0] sm:$0xff]
        %v515 = vld [vmem:[%s485 + $0xe8] sm:$0xff]
        %v516 = vld [vmem:[%s485 + $0xf0] sm:$0xff]
        %v517 = vld [vmem:[%s485 + $0xf8] sm:$0xff]
        %v518 = vld [vmem:[%s485 + $0x100] sm:$0xff]
        %v519 = vld [vmem:[%s485 + $0x108] sm:$0xff]
        %v520 = vld [vmem:[%s485 + $0x110] sm:$0xff]
        %v521 = vld [vmem:[%s485 + $0x118] sm:$0xff]
        %v522 = vld [vmem:[%s485 + $0x120] sm:$0xff]
        %v523 = vld [vmem:[%s485 + $0x128] sm:$0xff]
        %v524 = vld [vmem:[%s485 + $0x130] sm:$0xff]
        %v525 = vld [vmem:[%s485 + $0x138] sm:$0xff]
        %v526 = vld [vmem:[%s485 + $0x140] sm:$0xff]
        %v527 = vld [vmem:[%s485 + $0x148] sm:$0xff]
        %v528 = vld [vmem:[%s485 + $0x150] sm:$0xff]
        %v529 = vld [vmem:[%s485 + $0x158] sm:$0xff]
        %v530 = vld [vmem:[%s485 + $0x160] sm:$0xff]
        %v531 = vld [vmem:[%s485 + $0x168] sm:$0xff]
        %v532 = vld [vmem:[%s485 + $0x170] sm:$0xff]
        %v533 = vld [vmem:[%s485 + $0x178] sm:$0xff]
        %v534 = vld [vmem:[%s485 + $0x180] sm:$0xff]
        %v535 = vld [vmem:[%s485 + $0x188] sm:$0xff]
        %v536 = vld [vmem:[%s485 + $0x190] sm:$0xff]
        %v537 = vld [vmem:[%s485 + $0x198] sm:$0xff]
        %v538 = vld [vmem:[%s485 + $0x1a0] sm:$0xff]
        %v539 = vld [vmem:[%s485 + $0x1a8] sm:$0xff]
        %v540 = vld [vmem:[%s485 + $0x1b0] sm:$0xff]
        %v541 = vld [vmem:[%s485 + $0x1b8] sm:$0xff]
        %v542 = vld [vmem:[%s485 + $0x1c0] sm:$0xff]
        %v543 = vld [vmem:[%s485 + $0x1c8] sm:$0xff]
        %v544 = vld [vmem:[%s485 + $0x1d0] sm:$0xff]
        %v545 = vld [vmem:[%s485 + $0x1d8] sm:$0xff]
        %v546 = vld [vmem:[%s485 + $0x1e0] sm:$0xff]
        %v547 = vld [vmem:[%s485 + $0x1e8] sm:$0xff]
        %v548 = vld [vmem:[%s485 + $0x1f0] sm:$0xff]
        %v549 = vld [vmem:[%s485 + $0x1f8] sm:$0xff]
        %v550 = vsub.f32 %v421, %v486
        %v551 = vsub.f32 %v422, %v487
        %v552 = vsub.f32 %v423, %v488
        %v553 = vsub.f32 %v424, %v489
        %v554 = vsub.f32 %v425, %v490
        %v555 = vsub.f32 %v426, %v491
        %v556 = vsub.f32 %v427, %v492
        %v557 = vsub.f32 %v428, %v493
        %v558 = vsub.f32 %v429, %v494
        %v559 = vsub.f32 %v430, %v495
        %v560 = vsub.f32 %v431, %v496
        %v561 = vsub.f32 %v432, %v497
        %v562 = vsub.f32 %v433, %v498
        %v563 = vsub.f32 %v434, %v499
        %v564 = vsub.f32 %v435, %v500
        %v565 = vsub.f32 %v436, %v501
        %v566 = vsub.f32 %v437, %v502
        %v567 = vsub.f32 %v438, %v503
        %v568 = vsub.f32 %v439, %v504
        %v569 = vsub.f32 %v440, %v505
        %v570 = vsub.f32 %v441, %v506
        %v571 = vsub.f32 %v442, %v507
        %v572 = vsub.f32 %v443, %v508
        %v573 = vsub.f32 %v444, %v509
        %v574 = vsub.f32 %v445, %v510
        %v575 = vsub.f32 %v446, %v511
        %v576 = vsub.f32 %v447, %v512
        %v577 = vsub.f32 %v448, %v513
        %v578 = vsub.f32 %v449, %v514
        %v579 = vsub.f32 %v450, %v515
        %v580 = vsub.f32 %v451, %v516
        %v581 = vsub.f32 %v452, %v517
        %v582 = vsub.f32 %v453, %v518
        %v583 = vsub.f32 %v454, %v519
        %v584 = vsub.f32 %v455, %v520
        %v585 = vsub.f32 %v456, %v521
        %v586 = vsub.f32 %v457, %v522
        %v587 = vsub.f32 %v458, %v523
        %v588 = vsub.f32 %v459, %v524
        %v589 = vsub.f32 %v460, %v525
        %v590 = vsub.f32 %v461, %v526
        %v591 = vsub.f32 %v462, %v527
        %v592 = vsub.f32 %v463, %v528
        %v593 = vsub.f32 %v464, %v529
        %v594 = vsub.f32 %v465, %v530
        %v595 = vsub.f32 %v466, %v531
        %v596 = vsub.f32 %v467, %v532
        %v597 = vsub.f32 %v468, %v533
        %v598 = vsub.f32 %v469, %v534
        %v599 = vsub.f32 %v470, %v535
        %v600 = vsub.f32 %v471, %v536
        %v601 = vsub.f32 %v472, %v537
        %v602 = vsub.f32 %v473, %v538
        %v603 = vsub.f32 %v474, %v539
        %v604 = vsub.f32 %v475, %v540
        %v605 = vsub.f32 %v476, %v541
        %v606 = vsub.f32 %v477, %v542
        %v607 = vsub.f32 %v478, %v543
        %v608 = vsub.f32 %v479, %v544
        %v609 = vsub.f32 %v480, %v545
        %v610 = vsub.f32 %v481, %v546
        %v611 = vsub.f32 %v482, %v547
        %v612 = vsub.f32 %v483, %v548
        %v613 = vsub.f32 %v484, %v549
        %v614 = vmul.f32 %v550, %v550
        %v615 = vmul.f32 %v551, %v551
        %v616 = vmul.f32 %v552, %v552
        %v617 = vmul.f32 %v553, %v553
        %v618 = vmul.f32 %v554, %v554
        %v619 = vmul.f32 %v555, %v555
        %v620 = vmul.f32 %v556, %v556
        %v621 = vmul.f32 %v557, %v557
        %v622 = vmul.f32 %v558, %v558
        %v623 = vmul.f32 %v559, %v559
        %v624 = vmul.f32 %v560, %v560
        %v625 = vmul.f32 %v561, %v561
        %v626 = vmul.f32 %v562, %v562
        %v627 = vmul.f32 %v563, %v563
        %v628 = vmul.f32 %v564, %v564
        %v629 = vmul.f32 %v565, %v565
        %v630 = vmul.f32 %v566, %v566
        %v631 = vmul.f32 %v567, %v567
        %v632 = vmul.f32 %v568, %v568
        %v633 = vmul.f32 %v569, %v569
        %v634 = vmul.f32 %v570, %v570
        %v635 = vmul.f32 %v571, %v571
        %v636 = vmul.f32 %v572, %v572
        %v637 = vmul.f32 %v573, %v573
        %v638 = vmul.f32 %v574, %v574
        %v639 = vmul.f32 %v575, %v575
        %v640 = vmul.f32 %v576, %v576
        %v641 = vmul.f32 %v577, %v577
        %v642 = vmul.f32 %v578, %v578
        %v643 = vmul.f32 %v579, %v579
        %v644 = vmul.f32 %v580, %v580
        %v645 = vmul.f32 %v581, %v581
        %v646 = vmul.f32 %v582, %v582
        %v647 = vmul.f32 %v583, %v583
        %v648 = vmul.f32 %v584, %v584
        %v649 = vmul.f32 %v585, %v585
        %v650 = vmul.f32 %v586, %v586
        %v651 = vmul.f32 %v587, %v587
        %v652 = vmul.f32 %v588, %v588
        %v653 = vmul.f32 %v589, %v589
        %v654 = vmul.f32 %v590, %v590
        %v655 = vmul.f32 %v591, %v591
        %v656 = vmul.f32 %v592, %v592
        %v657 = vmul.f32 %v593, %v593
        %v658 = vmul.f32 %v594, %v594
        %v659 = vmul.f32 %v595, %v595
        %v660 = vmul.f32 %v596, %v596
        %v661 = vmul.f32 %v597, %v597
        %v662 = vmul.f32 %v598, %v598
        %v663 = vmul.f32 %v599, %v599
        %v664 = vmul.f32 %v600, %v600
        %v665 = vmul.f32 %v601, %v601
        %v666 = vmul.f32 %v602, %v602
        %v667 = vmul.f32 %v603, %v603
        %v668 = vmul.f32 %v604, %v604
        %v669 = vmul.f32 %v605, %v605
        %v670 = vmul.f32 %v606, %v606
        %v671 = vmul.f32 %v607, %v607
        %v672 = vmul.f32 %v608, %v608
        %v673 = vmul.f32 %v609, %v609
        %v674 = vmul.f32 %v610, %v610
        %v675 = vmul.f32 %v611, %v611
        %v676 = vmul.f32 %v612, %v612
        %v677 = vmul.f32 %v613, %v613
        %s678 = smul.u32 %s69, 2048
        %s679 = sadd.s32 %s678, %s419
        %v680 = vlaneseq
        %v681 = vshrl.u32 %v680, 7
        %v682 = vadd.s32 %v681, 8
        %v683 = vadd.s32 %v681, 16
        %v684 = vadd.s32 %v681, 24
        %v685 = vadd.s32 %v681, 32
        %v686 = vadd.s32 %v681, 40
        %v687 = vadd.s32 %v681, 48
        %v688 = vadd.s32 %v681, 56
        %v689 = vadd.s32 %v681, 64
        %v690 = vadd.s32 %v681, 72
        %v691 = vadd.s32 %v681, 80
        %v692 = vadd.s32 %v681, 88
        %v693 = vadd.s32 %v681, 96
        %v694 = vadd.s32 %v681, 104
        %v695 = vadd.s32 %v681, 112
        %v696 = vadd.s32 %v681, 120
        %v697 = vadd.s32 %v681, 128
        %v698 = vadd.s32 %v681, 136
        %v699 = vadd.s32 %v681, 144
        %v700 = vadd.s32 %v681, 152
        %v701 = vadd.s32 %v681, 160
        %v702 = vadd.s32 %v681, 168
        %v703 = vadd.s32 %v681, 176
        %v704 = vadd.s32 %v681, 184
        %v705 = vadd.s32 %v681, 192
        %v706 = vadd.s32 %v681, 200
        %v707 = vadd.s32 %v681, 208
        %v708 = vadd.s32 %v681, 216
        %v709 = vadd.s32 %v681, 224
        %v710 = vadd.s32 %v681, 232
        %v711 = vadd.s32 %v681, 240
        %v712 = vadd.s32 %v681, 248
        %v713 = vadd.s32 %v681, 256
        %v714 = vadd.s32 %v681, 264
        %v715 = vadd.s32 %v681, 272
        %v716 = vadd.s32 %v681, 280
        %v717 = vadd.s32 %v681, 288
        %v718 = vadd.s32 %v681, 296
        %v719 = vadd.s32 %v681, 304
        %v720 = vadd.s32 %v681, 312
        %v721 = vadd.s32 %v681, 320
        %v722 = vadd.s32 %v681, 328
        %v723 = vadd.s32 %v681, 336
        %v724 = vadd.s32 %v681, 344
        %v725 = vadd.s32 %v681, 352
        %v726 = vadd.s32 %v681, 360
        %v727 = vadd.s32 %v681, 368
        %v728 = vadd.s32 %v681, 376
        %v729 = vadd.s32 %v681, 384
        %v730 = vadd.s32 %v681, 392
        %v731 = vadd.s32 %v681, 400
        %v732 = vadd.s32 %v681, 408
        %v733 = vadd.s32 %v681, 416
        %v734 = vadd.s32 %v681, 424
        %v735 = vadd.s32 %v681, 432
        %v736 = vadd.s32 %v681, 440
        %v737 = vadd.s32 %v681, 448
        %v738 = vadd.s32 %v681, 456
        %v739 = vadd.s32 %v681, 464
        %v740 = vadd.s32 %v681, 472
        %v741 = vadd.s32 %v681, 480
        %v742 = vadd.s32 %v681, 488
        %v743 = vadd.s32 %v681, 496
        %v744 = vadd.s32 %v681, 504
        %v745 = vstv %s679
        %v746 = vadd.s32 %v745, %v681
        %v747 = vadd.s32 %v745, %v682
        %v748 = vadd.s32 %v745, %v683
        %v749 = vadd.s32 %v745, %v684
        %v750 = vadd.s32 %v745, %v685
        %v751 = vadd.s32 %v745, %v686
        %v752 = vadd.s32 %v745, %v687
        %v753 = vadd.s32 %v745, %v688
        %v754 = vadd.s32 %v745, %v689
        %v755 = vadd.s32 %v745, %v690
        %v756 = vadd.s32 %v745, %v691
        %v757 = vadd.s32 %v745, %v692
        %v758 = vadd.s32 %v745, %v693
        %v759 = vadd.s32 %v745, %v694
        %v760 = vadd.s32 %v745, %v695
        %v761 = vadd.s32 %v745, %v696
        %v762 = vadd.s32 %v745, %v697
        %v763 = vadd.s32 %v745, %v698
        %v764 = vadd.s32 %v745, %v699
        %v765 = vadd.s32 %v745, %v700
        %v766 = vadd.s32 %v745, %v701
        %v767 = vadd.s32 %v745, %v702
        %v768 = vadd.s32 %v745, %v703
        %v769 = vadd.s32 %v745, %v704
        %v770 = vadd.s32 %v745, %v705
        %v771 = vadd.s32 %v745, %v706
        %v772 = vadd.s32 %v745, %v707
        %v773 = vadd.s32 %v745, %v708
        %v774 = vadd.s32 %v745, %v709
        %v775 = vadd.s32 %v745, %v710
        %v776 = vadd.s32 %v745, %v711
        %v777 = vadd.s32 %v745, %v712
        %v778 = vadd.s32 %v745, %v713
        %v779 = vadd.s32 %v745, %v714
        %v780 = vadd.s32 %v745, %v715
        %v781 = vadd.s32 %v745, %v716
        %v782 = vadd.s32 %v745, %v717
        %v783 = vadd.s32 %v745, %v718
        %v784 = vadd.s32 %v745, %v719
        %v785 = vadd.s32 %v745, %v720
        %v786 = vadd.s32 %v745, %v721
        %v787 = vadd.s32 %v745, %v722
        %v788 = vadd.s32 %v745, %v723
        %v789 = vadd.s32 %v745, %v724
        %v790 = vadd.s32 %v745, %v725
        %v791 = vadd.s32 %v745, %v726
        %v792 = vadd.s32 %v745, %v727
        %v793 = vadd.s32 %v745, %v728
        %v794 = vadd.s32 %v745, %v729
        %v795 = vadd.s32 %v745, %v730
        %v796 = vadd.s32 %v745, %v731
        %v797 = vadd.s32 %v745, %v732
        %v798 = vadd.s32 %v745, %v733
        %v799 = vadd.s32 %v745, %v734
        %v800 = vadd.s32 %v745, %v735
        %v801 = vadd.s32 %v745, %v736
        %v802 = vadd.s32 %v745, %v737
        %v803 = vadd.s32 %v745, %v738
        %v804 = vadd.s32 %v745, %v739
        %v805 = vadd.s32 %v745, %v740
        %v806 = vadd.s32 %v745, %v741
        %v807 = vadd.s32 %v745, %v742
        %v808 = vadd.s32 %v745, %v743
        %v809 = vadd.s32 %v745, %v744
        %vm810 = vcmp.lt.s32.totalorder %v746, 2005
        %vm811 = vcmp.lt.s32.totalorder %v747, 2005
        %vm812 = vcmp.lt.s32.totalorder %v748, 2005
        %vm813 = vcmp.lt.s32.totalorder %v749, 2005
        %vm814 = vcmp.lt.s32.totalorder %v750, 2005
        %vm815 = vcmp.lt.s32.totalorder %v751, 2005
        %vm816 = vcmp.lt.s32.totalorder %v752, 2005
        %vm817 = vcmp.lt.s32.totalorder %v753, 2005
        %vm818 = vcmp.lt.s32.totalorder %v754, 2005
        %vm819 = vcmp.lt.s32.totalorder %v755, 2005
        %vm820 = vcmp.lt.s32.totalorder %v756, 2005
        %vm821 = vcmp.lt.s32.totalorder %v757, 2005
        %vm822 = vcmp.lt.s32.totalorder %v758, 2005
        %vm823 = vcmp.lt.s32.totalorder %v759, 2005
        %vm824 = vcmp.lt.s32.totalorder %v760, 2005
        %vm825 = vcmp.lt.s32.totalorder %v761, 2005
        %vm826 = vcmp.lt.s32.totalorder %v762, 2005
        %vm827 = vcmp.lt.s32.totalorder %v763, 2005
        %vm828 = vcmp.lt.s32.totalorder %v764, 2005
        %vm829 = vcmp.lt.s32.totalorder %v765, 2005
        %vm830 = vcmp.lt.s32.totalorder %v766, 2005
        %vm831 = vcmp.lt.s32.totalorder %v767, 2005
        %vm832 = vcmp.lt.s32.totalorder %v768, 2005
        %vm833 = vcmp.lt.s32.totalorder %v769, 2005
        %vm834 = vcmp.lt.s32.totalorder %v770, 2005
        %vm835 = vcmp.lt.s32.totalorder %v771, 2005
        %vm836 = vcmp.lt.s32.totalorder %v772, 2005
        %vm837 = vcmp.lt.s32.totalorder %v773, 2005
        %vm838 = vcmp.lt.s32.totalorder %v774, 2005
        %vm839 = vcmp.lt.s32.totalorder %v775, 2005
        %vm840 = vcmp.lt.s32.totalorder %v776, 2005
        %vm841 = vcmp.lt.s32.totalorder %v777, 2005
        %vm842 = vcmp.lt.s32.totalorder %v778, 2005
        %vm843 = vcmp.lt.s32.totalorder %v779, 2005
        %vm844 = vcmp.lt.s32.totalorder %v780, 2005
        %vm845 = vcmp.lt.s32.totalorder %v781, 2005
        %vm846 = vcmp.lt.s32.totalorder %v782, 2005
        %vm847 = vcmp.lt.s32.totalorder %v783, 2005
        %vm848 = vcmp.lt.s32.totalorder %v784, 2005
        %vm849 = vcmp.lt.s32.totalorder %v785, 2005
        %vm850 = vcmp.lt.s32.totalorder %v786, 2005
        %vm851 = vcmp.lt.s32.totalorder %v787, 2005
        %vm852 = vcmp.lt.s32.totalorder %v788, 2005
        %vm853 = vcmp.lt.s32.totalorder %v789, 2005
        %vm854 = vcmp.lt.s32.totalorder %v790, 2005
        %vm855 = vcmp.lt.s32.totalorder %v791, 2005
        %vm856 = vcmp.lt.s32.totalorder %v792, 2005
        %vm857 = vcmp.lt.s32.totalorder %v793, 2005
        %vm858 = vcmp.lt.s32.totalorder %v794, 2005
        %vm859 = vcmp.lt.s32.totalorder %v795, 2005
        %vm860 = vcmp.lt.s32.totalorder %v796, 2005
        %vm861 = vcmp.lt.s32.totalorder %v797, 2005
        %vm862 = vcmp.lt.s32.totalorder %v798, 2005
        %vm863 = vcmp.lt.s32.totalorder %v799, 2005
        %vm864 = vcmp.lt.s32.totalorder %v800, 2005
        %vm865 = vcmp.lt.s32.totalorder %v801, 2005
        %vm866 = vcmp.lt.s32.totalorder %v802, 2005
        %vm867 = vcmp.lt.s32.totalorder %v803, 2005
        %vm868 = vcmp.lt.s32.totalorder %v804, 2005
        %vm869 = vcmp.lt.s32.totalorder %v805, 2005
        %vm870 = vcmp.lt.s32.totalorder %v806, 2005
        %vm871 = vcmp.lt.s32.totalorder %v807, 2005
        %vm872 = vcmp.lt.s32.totalorder %v808, 2005
        %vm873 = vcmp.lt.s32.totalorder %v809, 2005
        %v874 = vsel %vm810, %v614, 0.0
        %v875 = vsel %vm811, %v615, 0.0
        %v876 = vsel %vm812, %v616, 0.0
        %v877 = vsel %vm813, %v617, 0.0
        %v878 = vsel %vm814, %v618, 0.0
        %v879 = vsel %vm815, %v619, 0.0
        %v880 = vsel %vm816, %v620, 0.0
        %v881 = vsel %vm817, %v621, 0.0
        %v882 = vsel %vm818, %v622, 0.0
        %v883 = vsel %vm819, %v623, 0.0
        %v884 = vsel %vm820, %v624, 0.0
        %v885 = vsel %vm821, %v625, 0.0
        %v886 = vsel %vm822, %v626, 0.0
        %v887 = vsel %vm823, %v627, 0.0
        %v888 = vsel %vm824, %v628, 0.0
        %v889 = vsel %vm825, %v629, 0.0
        %v890 = vsel %vm826, %v630, 0.0
        %v891 = vsel %vm827, %v631, 0.0
        %v892 = vsel %vm828, %v632, 0.0
        %v893 = vsel %vm829, %v633, 0.0
        %v894 = vsel %vm830, %v634, 0.0
        %v895 = vsel %vm831, %v635, 0.0
        %v896 = vsel %vm832, %v636, 0.0
        %v897 = vsel %vm833, %v637, 0.0
        %v898 = vsel %vm834, %v638, 0.0
        %v899 = vsel %vm835, %v639, 0.0
        %v900 = vsel %vm836, %v640, 0.0
        %v901 = vsel %vm837, %v641, 0.0
        %v902 = vsel %vm838, %v642, 0.0
        %v903 = vsel %vm839, %v643, 0.0
        %v904 = vsel %vm840, %v644, 0.0
        %v905 = vsel %vm841, %v645, 0.0
        %v906 = vsel %vm842, %v646, 0.0
        %v907 = vsel %vm843, %v647, 0.0
        %v908 = vsel %vm844, %v648, 0.0
        %v909 = vsel %vm845, %v649, 0.0
        %v910 = vsel %vm846, %v650, 0.0
        %v911 = vsel %vm847, %v651, 0.0
        %v912 = vsel %vm848, %v652, 0.0
        %v913 = vsel %vm849, %v653, 0.0
        %v914 = vsel %vm850, %v654, 0.0
        %v915 = vsel %vm851, %v655, 0.0
        %v916 = vsel %vm852, %v656, 0.0
        %v917 = vsel %vm853, %v657, 0.0
        %v918 = vsel %vm854, %v658, 0.0
        %v919 = vsel %vm855, %v659, 0.0
        %v920 = vsel %vm856, %v660, 0.0
        %v921 = vsel %vm857, %v661, 0.0
        %v922 = vsel %vm858, %v662, 0.0
        %v923 = vsel %vm859, %v663, 0.0
        %v924 = vsel %vm860, %v664, 0.0
        %v925 = vsel %vm861, %v665, 0.0
        %v926 = vsel %vm862, %v666, 0.0
        %v927 = vsel %vm863, %v667, 0.0
        %v928 = vsel %vm864, %v668, 0.0
        %v929 = vsel %vm865, %v669, 0.0
        %v930 = vsel %vm866, %v670, 0.0
        %v931 = vsel %vm867, %v671, 0.0
        %v932 = vsel %vm868, %v672, 0.0
        %v933 = vsel %vm869, %v673, 0.0
        %v934 = vsel %vm870, %v674, 0.0
        %v935 = vsel %vm871, %v675, 0.0
        %v936 = vsel %vm872, %v676, 0.0
        %v937 = vsel %vm873, %v677, 0.0
        %v938 = vadd.f32 %v874, %v875
        %v939 = vadd.f32 %v938, %v876
        %v940 = vadd.f32 %v939, %v877
        %v941 = vadd.f32 %v940, %v878
        %v942 = vadd.f32 %v941, %v879
        %v943 = vadd.f32 %v942, %v880
        %v944 = vadd.f32 %v943, %v881
        %v945 = vadd.f32 %v944, %v882
        %v946 = vadd.f32 %v945, %v883
        %v947 = vadd.f32 %v946, %v884
        %v948 = vadd.f32 %v947, %v885
        %v949 = vadd.f32 %v948, %v886
        %v950 = vadd.f32 %v949, %v887
        %v951 = vadd.f32 %v950, %v888
        %v952 = vadd.f32 %v951, %v889
        %v953 = vadd.f32 %v952, %v890
        %v954 = vadd.f32 %v953, %v891
        %v955 = vadd.f32 %v954, %v892
        %v956 = vadd.f32 %v955, %v893
        %v957 = vadd.f32 %v956, %v894
        %v958 = vadd.f32 %v957, %v895
        %v959 = vadd.f32 %v958, %v896
        %v960 = vadd.f32 %v959, %v897
        %v961 = vadd.f32 %v960, %v898
        %v962 = vadd.f32 %v961, %v899
        %v963 = vadd.f32 %v962, %v900
        %v964 = vadd.f32 %v963, %v901
        %v965 = vadd.f32 %v964, %v902
        %v966 = vadd.f32 %v965, %v903
        %v967 = vadd.f32 %v966, %v904
        %v968 = vadd.f32 %v967, %v905
        %v969 = vadd.f32 %v968, %v906
        %v970 = vadd.f32 %v969, %v907
        %v971 = vadd.f32 %v970, %v908
        %v972 = vadd.f32 %v971, %v909
        %v973 = vadd.f32 %v972, %v910
        %v974 = vadd.f32 %v973, %v911
        %v975 = vadd.f32 %v974, %v912
        %v976 = vadd.f32 %v975, %v913
        %v977 = vadd.f32 %v976, %v914
        %v978 = vadd.f32 %v977, %v915
        %v979 = vadd.f32 %v978, %v916
        %v980 = vadd.f32 %v979, %v917
        %v981 = vadd.f32 %v980, %v918
        %v982 = vadd.f32 %v981, %v919
        %v983 = vadd.f32 %v982, %v920
        %v984 = vadd.f32 %v983, %v921
        %v985 = vadd.f32 %v984, %v922
        %v986 = vadd.f32 %v985, %v923
        %v987 = vadd.f32 %v986, %v924
        %v988 = vadd.f32 %v987, %v925
        %v989 = vadd.f32 %v988, %v926
        %v990 = vadd.f32 %v989, %v927
        %v991 = vadd.f32 %v990, %v928
        %v992 = vadd.f32 %v991, %v929
        %v993 = vadd.f32 %v992, %v930
        %v994 = vadd.f32 %v993, %v931
        %v995 = vadd.f32 %v994, %v932
        %v996 = vadd.f32 %v995, %v933
        %v997 = vadd.f32 %v996, %v934
        %v998 = vadd.f32 %v997, %v935
        %v999 = vadd.f32 %v998, %v936
        %v1000 = vadd.f32 %v999, %v937
        %v1001 = vadd.f32 %v418, %v1000
      $region41: #{tpu_custom_call.1} parent=35 // loop_footer
        %s417 = sadd.s32 1, %s413
      $region42: #{tpu_custom_call.1} parent=35 // loop_footer_branch
        %412 = sbr.rel target = $region38
      $region43: #{tpu_custom_call.1} parent=35 // loop_exit
        _
      %v1002 = vadd.f32 %v411, %v418
      %1003 = vst [vmem:[#allocation7] sm:$0xff] %v1002
    $region36: #{tpu_custom_call.1} parent=1 // pred_fallthru
      _
    // Predicated region
    $region44: #{tpu_custom_call.1} parent=1 // pred_check
      _
    $region45: #{tpu_custom_call.1} parent=1 // pred_check_branch
      %1005 = sbr.rel (0) target = $region47
    $region46: #{tpu_custom_call.1} parent=1 // pred_region
      %s1007 = ssub.s32 128, 128
      %1008 = vsyncadd [#allocation4], %s1007
      %s1010 = sshll.u32 [#allocation7], 4
      %s1011 = int_to_ptr.vmem [resolvable:$true] %s1010
      %1013 = dma.vmem_to_hbm [thread:$0]  %s1011, 128, %s2, [#allocation4]
    $region47: #{tpu_custom_call.1} parent=1 // pred_fallthru
      _
    // Predicated region
    $region48: #{tpu_custom_call.1} parent=1 // pred_check
      _
    $region49: #{tpu_custom_call.1} parent=1 // pred_check_branch
      %1015 = sbr.rel (0) target = $region51
    $region50: #{tpu_custom_call.1} parent=1 // pred_region
      %1016 = dma.done [#allocation4], 128
    $region51: #{tpu_custom_call.1} parent=1 // pred_fallthru
      _
    %1017 = vsyncpa [#allocation3], 1
    %1018 = vsyncpa [#allocation6], 1
    %1019 = vsyncpa [#allocation4], 1

</llo_original>
